<compile_context>
chip_gen: v7x
topology: tpu7x:2x2x1
jax: 0.10.0
libtpu: 0.0.40
codegen_flags: <defaults>
</compile_context>

<pallas_src>
import functools

import jax
import jax.numpy as jnp
from jax.experimental import pallas as pl
from jax.experimental.pallas import tpu as pltpu

LANE = 128  # vreg lane width; hidden dims padded to this.


def _round_up(n, m):
    return ((n + m - 1) // m) * m


def _pad2(a, rows, cols):
    """Zero-pad a 2-D array up to (rows, cols)."""
    out = jnp.zeros((rows, cols), a.dtype)
    return out.at[: a.shape[0], : a.shape[1]].set(a)


def leadnn_kernel(x_ref, w1_ref, b1_ref, w2_ref, b2_ref, w3_ref, b3_ref, o_ref):
    x = x_ref[...]  # (TB, F) bf16

    # Layer 1: Linear(F, 16) + ReLU. bf16 MXU matmul, f32 accumulate/epilogue.
    h1 = jnp.dot(x, w1_ref[...], preferred_element_type=jnp.float32) + b1_ref[...]
    h1 = jnp.maximum(h1, 0.0).astype(jnp.bfloat16)  # pad lanes are exactly 0

    # Layer 2: Linear(16, 8) + ReLU (padded rows/cols of w2 are zero).
    h2 = jnp.dot(h1, w2_ref[...], preferred_element_type=jnp.float32) + b2_ref[...]
    h2 = jnp.maximum(h2, 0.0)  # (TB, 128) f32, only first 8 lanes nonzero

    # Layer 3: Linear(8, 1) off the MXU — VPU multiply by broadcast w3 row,
    # XLU lane reduction -> (TB, 1) column, + scalar bias.
    h3 = jnp.sum(h2 * w3_ref[...], axis=-1, keepdims=True) + b3_ref[...]

    # Sigmoid on the narrow column only, as a single EUP op (exact):
    # sigmoid(z) = 0.5 * (tanh(0.5 * z) + 1)
    o_ref[...] = (0.5 * (jnp.tanh(0.5 * h3) + 1.0)).astype(o_ref.dtype)


def pad_params(w1, b1, w2, b2, w3, b3):
    """Pad parameters to lane-dense 128-wide tiles; matmul weights in bf16."""
    F = w1.shape[0]
    return (
        _pad2(w1, F, LANE).astype(jnp.bfloat16),        # (F, 128)   bf16
        _pad2(b1.reshape(1, -1), 1, LANE),               # (1, 128)   f32
        _pad2(w2, LANE, LANE).astype(jnp.bfloat16),      # (128, 128) bf16
        _pad2(b2.reshape(1, -1), 1, LANE),               # (1, 128)   f32
        _pad2(w3.T, 1, LANE),                            # (1, 128)   f32 (w3 row)
        b3.reshape(1, 1).astype(jnp.float32),            # (1, 1)     f32
    )


@functools.partial(jax.jit, static_argnames=("tb",))
def leadnn_forward(x, params, *, tb=4096):
    """x: (B, F) f32 standardized features; params: padded (see pad_params)."""
    w1p, b1p, w2p, b2p, w3p, b3p = params
    B, F = x.shape

    # Ship activations bf16 (halves the dominant HBM read).
    x = x.astype(jnp.bfloat16)

    # Batch tile: multiple of 8 sublanes, capped so the grid keeps >= 2 steps
    # (lets v7x's two TensorCores split the "parallel" batch axis).
    tb = min(tb, _round_up(pl.cdiv(B, 2), 8))
    tb = _round_up(max(tb, 8), 8)
    grid = (pl.cdiv(B, tb),)  # partial last block handled by Pallas

    out = pl.pallas_call(
        leadnn_kernel,
        out_shape=jax.ShapeDtypeStruct((B, 1), jnp.float32),
        grid=grid,
        in_specs=[
            pl.BlockSpec((tb, F), lambda i: (i, 0)),     # x: tiled over batch
            pl.BlockSpec(w1p.shape, lambda i: (0, 0)),   # weights: VMEM-resident
            pl.BlockSpec(b1p.shape, lambda i: (0, 0)),
            pl.BlockSpec(w2p.shape, lambda i: (0, 0)),
            pl.BlockSpec(b2p.shape, lambda i: (0, 0)),
            pl.BlockSpec(w3p.shape, lambda i: (0, 0)),
            pl.BlockSpec(b3p.shape, lambda i: (0, 0)),
        ],
        out_specs=pl.BlockSpec((tb, 1), lambda i: (i, 0)),  # narrow output column
        compiler_params=pltpu.CompilerParams(
            dimension_semantics=("parallel",),  # shard batch over v7x's 2 TCs
        ),
    )(x, w1p, b1p, w2p, b2p, w3p, b3p)

    return out


def init_linear(key, fan_in, fan_out):
    # Mimic PyTorch nn.Linear default init: U(-1/sqrt(fan_in), 1/sqrt(fan_in)).
    kw, kb = jax.random.split(key)
    bound = 1.0 / jnp.sqrt(float(fan_in))
    w = jax.random.uniform(kw, (fan_in, fan_out), jnp.float32, -bound, bound)
    b = jax.random.uniform(kb, (fan_out,), jnp.float32, -bound, bound)
    return w, b


if __name__ == "__main__":
    key = jax.random.PRNGKey(0)
    k_x, k1, k2, k3 = jax.random.split(key, 4)

    B, F = 32, 32  # batch, input features (X_train.shape[1] taken as 32)

    # Input assumed already standardized (StandardScaler in the reference);
    # standard-normal synthetic data plays that role here.
    x = jax.random.normal(k_x, (B, F), jnp.float32)

    w1, b1 = init_linear(k1, F, 16)
    w2, b2 = init_linear(k2, 16, 8)
    w3, b3 = init_linear(k3, 8, 1)
    params = pad_params(w1, b1, w2, b2, w3, b3)

    # tb=16 exercises a 2-step batch grid even at this small test size.
    out = leadnn_forward(x, params, tb=16)
    out = jax.block_until_ready(out)
    assert out.shape == (B, 1)

    # Reference 1: pure-JAX f32 (module semantics); loose tol for bf16 matmuls.
    ref32 = jnp.maximum(x @ w1 + b1[None, :], 0.0)
    ref32 = jnp.maximum(ref32 @ w2 + b2[None, :], 0.0)
    ref32 = jax.nn.sigmoid(ref32 @ w3 + b3[None, :])
    assert jnp.allclose(out, ref32, atol=2e-2), "mismatch vs f32 reference"

    # Reference 2: same bf16 casts as the kernel; tight tolerance.
    xb = x.astype(jnp.bfloat16)
    r = jnp.dot(xb, w1.astype(jnp.bfloat16), preferred_element_type=jnp.float32) + b1
    r = jnp.maximum(r, 0.0).astype(jnp.bfloat16)
    r = jnp.dot(r, w2.astype(jnp.bfloat16), preferred_element_type=jnp.float32) + b2
    r = jnp.maximum(r, 0.0)
    r = jax.nn.sigmoid(r @ w3 + b3[None, :])
    assert jnp.allclose(out, r, atol=5e-4), "mismatch vs bf16-matched reference"

    print("KERNEL_OK")
</pallas_src>

<mosaic_0001>
module attributes {stable_mosaic.version = 11 : i64} {
  func.func @leadnn_kernel(%arg0: i32, %arg1: memref<16x32xbf16, #tpu.memory_space<vmem>>, %arg2: memref<32x128xbf16, #tpu.memory_space<vmem>>, %arg3: memref<1x128xf32, #tpu.memory_space<vmem>>, %arg4: memref<128x128xbf16, #tpu.memory_space<vmem>>, %arg5: memref<1x128xf32, #tpu.memory_space<vmem>>, %arg6: memref<1x128xf32, #tpu.memory_space<vmem>>, %arg7: memref<1x1xf32, #tpu.memory_space<vmem>>, %arg8: memref<16x1xf32, #tpu.memory_space<vmem>>) attributes {dimension_semantics = [#tpu.dimension_semantics<parallel>], iteration_bounds = array<i64: 2>, scalar_prefetch = 0 : i64, scratch_operands = 0 : i64, tpu.core_type = #tpu.core_type<tc>, window_params = [{transform_indices = @transform_0, window_bounds = array<i64: 16, 32>}, {pipeline_mode = #tpu.pipeline_mode<synchronous>, transform_indices = @transform_1, window_bounds = array<i64: 32, 128>}, {pipeline_mode = #tpu.pipeline_mode<synchronous>, transform_indices = @transform_2, window_bounds = array<i64: 1, 128>}, {pipeline_mode = #tpu.pipeline_mode<synchronous>, transform_indices = @transform_3, window_bounds = array<i64: 128, 128>}, {pipeline_mode = #tpu.pipeline_mode<synchronous>, transform_indices = @transform_4, window_bounds = array<i64: 1, 128>}, {pipeline_mode = #tpu.pipeline_mode<synchronous>, transform_indices = @transform_5, window_bounds = array<i64: 1, 128>}, {pipeline_mode = #tpu.pipeline_mode<synchronous>, transform_indices = @transform_6, window_bounds = array<i64: 1, 1>}, {transform_indices = @transform_7, window_bounds = array<i64: 16, 1>}]} {
    %c0 = arith.constant 0 : index
    %c0_0 = arith.constant 0 : index
    %0 = vector.load %arg1[%c0, %c0_0] : memref<16x32xbf16, #tpu.memory_space<vmem>>, vector<16x32xbf16>
    %c0_1 = arith.constant 0 : index
    %c0_2 = arith.constant 0 : index
    %1 = vector.load %arg2[%c0_1, %c0_2] : memref<32x128xbf16, #tpu.memory_space<vmem>>, vector<32x128xbf16>
    %cst = arith.constant dense<0.000000e+00> : vector<16x128xf32>
    %2 = tpu.matmul %0, %1, %cst {dimension_numbers = #tpu.dot_dimension_numbers<[1], [0], [0], [1], [0, 0, 1, 1], [], []>} : vector<16x32xbf16>, vector<32x128xbf16>, vector<16x128xf32> -> vector<16x128xf32>
    %c0_3 = arith.constant 0 : index
    %c0_4 = arith.constant 0 : index
    %3 = vector.load %arg3[%c0_3, %c0_4] : memref<1x128xf32, #tpu.memory_space<vmem>>, vector<1x128xf32>
    %4 = vector.broadcast %3 : vector<1x128xf32> to vector<16x128xf32>
    %5 = arith.addf %2, %4 : vector<16x128xf32>
    %cst_5 = arith.constant 0.000000e+00 : f32
    %6 = vector.broadcast %cst_5 : f32 to vector<16x128xf32>
    %7 = arith.maximumf %5, %6 : vector<16x128xf32>
    %8 = arith.truncf %7 : vector<16x128xf32> to vector<16x128xbf16>
    %c0_6 = arith.constant 0 : index
    %c0_7 = arith.constant 0 : index
    %9 = vector.load %arg4[%c0_6, %c0_7] : memref<128x128xbf16, #tpu.memory_space<vmem>>, vector<128x128xbf16>
    %cst_8 = arith.constant dense<0.000000e+00> : vector<16x128xf32>
    %10 = tpu.matmul %8, %9, %cst_8 {dimension_numbers = #tpu.dot_dimension_numbers<[1], [0], [0], [1], [0, 0, 1, 1], [], []>} : vector<16x128xbf16>, vector<128x128xbf16>, vector<16x128xf32> -> vector<16x128xf32>
    %c0_9 = arith.constant 0 : index
    %c0_10 = arith.constant 0 : index
    %11 = vector.load %arg5[%c0_9, %c0_10] : memref<1x128xf32, #tpu.memory_space<vmem>>, vector<1x128xf32>
    %12 = vector.broadcast %11 : vector<1x128xf32> to vector<16x128xf32>
    %13 = arith.addf %10, %12 : vector<16x128xf32>
    %cst_11 = arith.constant 0.000000e+00 : f32
    %14 = vector.broadcast %cst_11 : f32 to vector<16x128xf32>
    %15 = arith.maximumf %13, %14 : vector<16x128xf32>
    %c0_12 = arith.constant 0 : index
    %c0_13 = arith.constant 0 : index
    %16 = vector.load %arg6[%c0_12, %c0_13] : memref<1x128xf32, #tpu.memory_space<vmem>>, vector<1x128xf32>
    %17 = vector.broadcast %16 : vector<1x128xf32> to vector<16x128xf32>
    %18 = arith.mulf %15, %17 : vector<16x128xf32>
    %cst_14 = arith.constant dense<0.000000e+00> : vector<16xf32>
    %19 = vector.multi_reduction <add>, %18, %cst_14 [1] : vector<16x128xf32> to vector<16xf32>
    %20 = vector.shape_cast %19 : vector<16xf32> to vector<16x1xf32>
    %c0_15 = arith.constant 0 : index
    %c0_16 = arith.constant 0 : index
    %21 = vector.load %arg7[%c0_15, %c0_16] : memref<1x1xf32, #tpu.memory_space<vmem>>, vector<1x1xf32>
    %22 = vector.broadcast %21 : vector<1x1xf32> to vector<16x1xf32>
    %23 = arith.addf %20, %22 : vector<16x1xf32>
    %cst_17 = arith.constant 5.000000e-01 : f32
    %24 = vector.broadcast %cst_17 : f32 to vector<16x1xf32>
    %25 = arith.mulf %24, %23 : vector<16x1xf32>
    %26 = math.tanh %25 : vector<16x1xf32>
    %cst_18 = arith.constant 1.000000e+00 : f32
    %27 = vector.broadcast %cst_18 : f32 to vector<16x1xf32>
    %28 = arith.addf %26, %27 : vector<16x1xf32>
    %cst_19 = arith.constant 5.000000e-01 : f32
    %29 = vector.broadcast %cst_19 : f32 to vector<16x1xf32>
    %30 = arith.mulf %29, %28 : vector<16x1xf32>
    %c0_20 = arith.constant 0 : index
    %c0_21 = arith.constant 0 : index
    %31 = vector.load %arg8[%c0_20, %c0_21] : memref<16x1xf32, #tpu.memory_space<vmem>>, vector<16x1xf32>
    tpu.vector_store %arg8[%c0_20, %c0_21], %30 {strides = array<i32>} : memref<16x1xf32, #tpu.memory_space<vmem>>, vector<16x1xf32>,
    return
  }
  func.func @transform_0(%arg0: i32) -> (i32, i32) {
    %c0_i32 = arith.constant 0 : i32
    %c0_i32_0 = arith.constant 0 : i32
    return %arg0, %c0_i32 : i32, i32
  }
  func.func @transform_1(%arg0: i32) -> (i32, i32) {
    %c0_i32 = arith.constant 0 : i32
    %c0_i32_0 = arith.constant 0 : i32
    %c0_i32_1 = arith.constant 0 : i32
    return %c0_i32, %c0_i32_0 : i32, i32
  }
  func.func @transform_2(%arg0: i32) -> (i32, i32) {
    %c0_i32 = arith.constant 0 : i32
    %c0_i32_0 = arith.constant 0 : i32
    %c0_i32_1 = arith.constant 0 : i32
    return %c0_i32, %c0_i32_0 : i32, i32
  }
  func.func @transform_3(%arg0: i32) -> (i32, i32) {
    %c0_i32 = arith.constant 0 : i32
    %c0_i32_0 = arith.constant 0 : i32
    %c0_i32_1 = arith.constant 0 : i32
    return %c0_i32, %c0_i32_0 : i32, i32
  }
  func.func @transform_4(%arg0: i32) -> (i32, i32) {
    %c0_i32 = arith.constant 0 : i32
    %c0_i32_0 = arith.constant 0 : i32
    %c0_i32_1 = arith.constant 0 : i32
    return %c0_i32, %c0_i32_0 : i32, i32
  }
  func.func @transform_5(%arg0: i32) -> (i32, i32) {
    %c0_i32 = arith.constant 0 : i32
    %c0_i32_0 = arith.constant 0 : i32
    %c0_i32_1 = arith.constant 0 : i32
    return %c0_i32, %c0_i32_0 : i32, i32
  }
  func.func @transform_6(%arg0: i32) -> (i32, i32) {
    %c0_i32 = arith.constant 0 : i32
    %c0_i32_0 = arith.constant 0 : i32
    %c0_i32_1 = arith.constant 0 : i32
    return %c0_i32, %c0_i32_0 : i32, i32
  }
  func.func @transform_7(%arg0: i32) -> (i32, i32) {
    %c0_i32 = arith.constant 0 : i32
    %c0_i32_0 = arith.constant 0 : i32
    return %arg0, %c0_i32 : i32, i32
  }
}

</mosaic_0001>

<llo_original>
// kernel: leadnn_forward.1
$region0: #{leadnn_forward.1}
  #allocation0 [shape = 'u32[]', space=smem, size = 0x4, offset = 0x4, fixed_abs, tag = 'smem constant byte address 0x4 - core index']
  #allocation1 [shape = 'u32[144,128]{1,0:T(1,128)}', space=vmem, size = 0x12000, scoped, tag = 'internal scratch']
  #allocation2 [shape = 'f32[1,1]{1,0:T(1,128)S(1)}', space=vmem, size = 0x200, scoped, tag = 'scoped memory for leadnn_forward.1']
  %s0 = inlined_call_operand.vmem [shape: bf16[32,32], index: 0, kind: input, shape index: {}]
  %s1 = inlined_call_operand.vmem [shape: bf16[32,128], index: 1, kind: input, shape index: {}]
  %s2 = inlined_call_operand.vmem [shape: f32[1,128], index: 2, kind: input, shape index: {}]
  %s3 = inlined_call_operand.hbm [shape: bf16[128,128], index: 3, kind: input, shape index: {}]
  %s4 = inlined_call_operand.vmem [shape: f32[1,128], index: 4, kind: input, shape index: {}]
  %s5 = inlined_call_operand.vmem [shape: f32[1,128], index: 5, kind: input, shape index: {}]
  %s6 = inlined_call_operand.<no memory space> [shape: f32[1,1], index: 6, kind: input, shape index: {}]
  %s7 = inlined_call_operand.vmem [shape: f32[32,1], index: 7, kind: output, shape index: {}]
  %s8 = sld [smem:[#allocation0]]
  $region65: #{leadnn_forward.1} parent=0
    _
  %s10 = ssub.s32 1, %s8
  %s11 = scalar_select 0, %s10, %s8
  %v12 = vstv %s6
  %13 = vst [vmem:[#allocation2] sm:$0x1] %v12
  $region1: #{leadnn_forward.1} parent=0
    #allocation3 [shape = 'u8[32768]{0}', space=vmem, size = 0x8000, scoped, tag = 'input window, operand 3, single buffered']
    #allocation4 [shape = 's32[2]{0}', space=sflag, size = 0x8, scoped, tag = 'scoped memory for leadnn_forward.1']
    %14 = vsyncpa [#allocation4], 0
    loop: start=0, step=1, limit=4
    $region2: #{leadnn_forward.1} parent=1 // loop_pre_header
      _
    $region3: #{leadnn_forward.1} parent=1 // loop_header
      %s16 = sphi 0, %s20
      %p17 = scmp.ge.s32.totalorder %s16, 4
      %s26 = sphi 0, %s28
      %s29 = sphi 0, %s26
      %s30 = sphi 0, %s29
      %s46 = sphi 0, %s30
      %s50 = sphi 0, %s50
      %s52 = sphi 0, %s50
      %s53 = sphi 0, %s52
      %s67 = sphi 0, %s53
      %s71 = sphi 0, %s71
      %s73 = sphi 0, %s71
      %s74 = sphi 0, %s73
      %s88 = sphi 0, %s74
      %s92 = sphi 0, %s92
      %s94 = sphi 0, %s92
      %s95 = sphi 0, %s94
      %s109 = sphi 0, %s95
      %s113 = sphi 0, %s113
      %s115 = sphi 0, %s113
      %s116 = sphi 0, %s115
      %s130 = sphi 0, %s116
      %s134 = sphi 0, %s134
      %s136 = sphi 0, %s134
      %s137 = sphi 0, %s136
      %s151 = sphi 0, %s137
      %s155 = sphi 0, %s155
      %s157 = sphi 0, %s155
      %s158 = sphi 0, %s157
      %s172 = sphi 0, %s158
      %s178 = sphi 0, %s180
      %s181 = sphi 0, %s178
      %s182 = sphi 0, %s181
      %s198 = sphi 0, %s182
    $region4: #{leadnn_forward.1} parent=1 // loop_header_branch
      %19 = sbr.rel (%p17) target = $region8
    $region5: #{leadnn_forward.1} parent=1 // loop_body
      %s21 = ssub.s32 %s16, 1
      %s22 = ssub.s32 %s16, 2
      %s23 = sadd.s32 %s16, 1
      %s24 = ssub.s32 %s16, %s23
      %p25 = scmp.eq.s32.totalorder %s24, 0
      %s27 = sadd.s32 %s26, 1
      %s28 = scalar_select %p25, %s26, %s27
      %p31 = pneg %p25
      %p32 = scmp.eq.s32.totalorder %s16, 1
      %p33 = por %p31, %p32
      %p34 = scmp.ne.s32.totalorder %s26, %s29
      %p35 = scmp.eq.s32.totalorder %s16, 0
      %p36 = por %p34, %p35
      %p37 = scmp.ne.s32.totalorder %s26, %s29
      %p38 = scmp.eq.s32.totalorder %s21, 1
      %p39 = por %p37, %p38
      %p40 = scmp.ne.s32.totalorder %s29, %s30
      %p41 = scmp.eq.s32.totalorder %s21, 0
      %p42 = por %p40, %p41
      %p43 = scmp.ne.s32.totalorder %s29, %s30
      %p44 = scmp.eq.s32.totalorder %s22, 1
      %p45 = por %p43, %p44
      %p47 = scmp.ne.s32.totalorder %s30, %s46
      %p48 = scmp.eq.s32.totalorder %s22, 0
      %p49 = por %p47, %p48
      %s51 = sadd.s32 %s50, 1
      %p54 = scmp.eq.s32.totalorder %s16, 1
      %p55 = scmp.ne.s32.totalorder %s50, %s52
      %p56 = scmp.eq.s32.totalorder %s16, 0
      %p57 = por %p55, %p56
      %p58 = scmp.ne.s32.totalorder %s50, %s52
      %p59 = scmp.eq.s32.totalorder %s21, 1
      %p60 = por %p58, %p59
      %p61 = scmp.ne.s32.totalorder %s52, %s53
      %p62 = scmp.eq.s32.totalorder %s21, 0
      %p63 = por %p61, %p62
      %p64 = scmp.ne.s32.totalorder %s52, %s53
      %p65 = scmp.eq.s32.totalorder %s22, 1
      %p66 = por %p64, %p65
      %p68 = scmp.ne.s32.totalorder %s53, %s67
      %p69 = scmp.eq.s32.totalorder %s22, 0
      %p70 = por %p68, %p69
      %s72 = sadd.s32 %s71, 1
      %p75 = scmp.eq.s32.totalorder %s16, 1
      %p76 = scmp.ne.s32.totalorder %s71, %s73
      %p77 = scmp.eq.s32.totalorder %s16, 0
      %p78 = por %p76, %p77
      %p79 = scmp.ne.s32.totalorder %s71, %s73
      %p80 = scmp.eq.s32.totalorder %s21, 1
      %p81 = por %p79, %p80
      %p82 = scmp.ne.s32.totalorder %s73, %s74
      %p83 = scmp.eq.s32.totalorder %s21, 0
      %p84 = por %p82, %p83
      %p85 = scmp.ne.s32.totalorder %s73, %s74
      %p86 = scmp.eq.s32.totalorder %s22, 1
      %p87 = por %p85, %p86
      %p89 = scmp.ne.s32.totalorder %s74, %s88
      %p90 = scmp.eq.s32.totalorder %s22, 0
      %p91 = por %p89, %p90
      %s93 = sadd.s32 %s92, 1
      %p96 = scmp.eq.s32.totalorder %s16, 1
      %p97 = scmp.ne.s32.totalorder %s92, %s94
      %p98 = scmp.eq.s32.totalorder %s16, 0
      %p99 = por %p97, %p98
      %p100 = scmp.ne.s32.totalorder %s92, %s94
      %p101 = scmp.eq.s32.totalorder %s21, 1
      %p102 = por %p100, %p101
      %p103 = scmp.ne.s32.totalorder %s94, %s95
      %p104 = scmp.eq.s32.totalorder %s21, 0
      %p105 = por %p103, %p104
      %p106 = scmp.ne.s32.totalorder %s94, %s95
      %p107 = scmp.eq.s32.totalorder %s22, 1
      %p108 = por %p106, %p107
      %p110 = scmp.ne.s32.totalorder %s95, %s109
      %p111 = scmp.eq.s32.totalorder %s22, 0
      %p112 = por %p110, %p111
      %s114 = sadd.s32 %s113, 1
      %p117 = scmp.eq.s32.totalorder %s16, 1
      %p118 = scmp.ne.s32.totalorder %s113, %s115
      %p119 = scmp.eq.s32.totalorder %s16, 0
      %p120 = por %p118, %p119
      %p121 = scmp.ne.s32.totalorder %s113, %s115
      %p122 = scmp.eq.s32.totalorder %s21, 1
      %p123 = por %p121, %p122
      %p124 = scmp.ne.s32.totalorder %s115, %s116
      %p125 = scmp.eq.s32.totalorder %s21, 0
      %p126 = por %p124, %p125
      %p127 = scmp.ne.s32.totalorder %s115, %s116
      %p128 = scmp.eq.s32.totalorder %s22, 1
      %p129 = por %p127, %p128
      %p131 = scmp.ne.s32.totalorder %s116, %s130
      %p132 = scmp.eq.s32.totalorder %s22, 0
      %p133 = por %p131, %p132
      %s135 = sadd.s32 %s134, 1
      %p138 = scmp.eq.s32.totalorder %s16, 1
      %p139 = scmp.ne.s32.totalorder %s134, %s136
      %p140 = scmp.eq.s32.totalorder %s16, 0
      %p141 = por %p139, %p140
      %p142 = scmp.ne.s32.totalorder %s134, %s136
      %p143 = scmp.eq.s32.totalorder %s21, 1
      %p144 = por %p142, %p143
      %p145 = scmp.ne.s32.totalorder %s136, %s137
      %p146 = scmp.eq.s32.totalorder %s21, 0
      %p147 = por %p145, %p146
      %p148 = scmp.ne.s32.totalorder %s136, %s137
      %p149 = scmp.eq.s32.totalorder %s22, 1
      %p150 = por %p148, %p149
      %p152 = scmp.ne.s32.totalorder %s137, %s151
      %p153 = scmp.eq.s32.totalorder %s22, 0
      %p154 = por %p152, %p153
      %s156 = sadd.s32 %s155, 1
      %p159 = scmp.eq.s32.totalorder %s16, 1
      %p160 = scmp.ne.s32.totalorder %s155, %s157
      %p161 = scmp.eq.s32.totalorder %s16, 0
      %p162 = por %p160, %p161
      %p163 = scmp.ne.s32.totalorder %s155, %s157
      %p164 = scmp.eq.s32.totalorder %s21, 1
      %p165 = por %p163, %p164
      %p166 = scmp.ne.s32.totalorder %s157, %s158
      %p167 = scmp.eq.s32.totalorder %s21, 0
      %p168 = por %p166, %p167
      %p169 = scmp.ne.s32.totalorder %s157, %s158
      %p170 = scmp.eq.s32.totalorder %s22, 1
      %p171 = por %p169, %p170
      %p173 = scmp.ne.s32.totalorder %s158, %s172
      %p174 = scmp.eq.s32.totalorder %s22, 0
      %p175 = por %p173, %p174
      %s176 = ssub.s32 %s16, %s23
      %p177 = scmp.eq.s32.totalorder %s176, 0
      %s179 = sadd.s32 %s178, 1
      %s180 = scalar_select %p177, %s178, %s179
      %p183 = pneg %p177
      %p184 = scmp.eq.s32.totalorder %s16, 1
      %p185 = por %p183, %p184
      %p186 = scmp.ne.s32.totalorder %s178, %s181
      %p187 = scmp.eq.s32.totalorder %s16, 0
      %p188 = por %p186, %p187
      %p189 = scmp.ne.s32.totalorder %s178, %s181
      %p190 = scmp.eq.s32.totalorder %s21, 1
      %p191 = por %p189, %p190
      %p192 = scmp.ne.s32.totalorder %s181, %s182
      %p193 = scmp.eq.s32.totalorder %s21, 0
      %p194 = por %p192, %p193
      %p195 = scmp.ne.s32.totalorder %s181, %s182
      %p196 = scmp.eq.s32.totalorder %s22, 1
      %p197 = por %p195, %p196
      %p199 = scmp.ne.s32.totalorder %s182, %s198
      %p200 = scmp.eq.s32.totalorder %s22, 0
      %p201 = por %p199, %p200
      %p202 = scmp.le.s32.totalorder 1, %s16
      %p203 = scmp.lt.s32.totalorder %s16, 3
      %p204 = pnand %p202, %p203
      %p205 = pneg %p204
      // Predicated region
      $region9: #{leadnn_forward.1} parent=5 // pred_check
        _
      $region10: #{leadnn_forward.1} parent=5 // pred_check_branch
        %207 = sbr.rel (%p204) target = $region12
      $region11: #{leadnn_forward.1} parent=5 // pred_region
        %s208 = ssub.s32 %s16, 1
        // Predicated region
        $region13: #{leadnn_forward.1} parent=11 // pred_check
          %p209 = pneg %p63
        $region14: #{leadnn_forward.1} parent=11 // pred_check_branch
          %211 = sbr.rel (%p209) target = $region16
        $region15: #{leadnn_forward.1} parent=11 // pred_region
          _
        $region16: #{leadnn_forward.1} parent=11 // pred_fallthru
          _
        // Predicated region
        $region17: #{leadnn_forward.1} parent=11 // pred_check
          %p212 = pneg %p84
        $region18: #{leadnn_forward.1} parent=11 // pred_check_branch
          %214 = sbr.rel (%p212) target = $region20
        $region19: #{leadnn_forward.1} parent=11 // pred_region
          _
        $region20: #{leadnn_forward.1} parent=11 // pred_fallthru
          _
        // Predicated region
        $region21: #{leadnn_forward.1} parent=11 // pred_check
          %p215 = pneg %p105
        $region22: #{leadnn_forward.1} parent=11 // pred_check_branch
          %217 = sbr.rel (%p215) target = $region24
        $region23: #{leadnn_forward.1} parent=11 // pred_region
          %s219 = ssub.s32 1024, 1024
          %220 = vsyncadd [#allocation4], %s219
          %s221 = sshll.u32 [#allocation3], 4
          %s222 = int_to_ptr.vmem [resolvable:$true] %s221
          %227 = dma.hbm_to_vmem [thread:$0]  %s3, 1024, %s222, [#allocation4], 64, 64, 4
        $region24: #{leadnn_forward.1} parent=11 // pred_fallthru
          _
        // Predicated region
        $region25: #{leadnn_forward.1} parent=11 // pred_check
          %p228 = pneg %p126
        $region26: #{leadnn_forward.1} parent=11 // pred_check_branch
          %230 = sbr.rel (%p228) target = $region28
        $region27: #{leadnn_forward.1} parent=11 // pred_region
          _
        $region28: #{leadnn_forward.1} parent=11 // pred_fallthru
          _
        // Predicated region
        $region29: #{leadnn_forward.1} parent=11 // pred_check
          %p231 = pneg %p147
        $region30: #{leadnn_forward.1} parent=11 // pred_check_branch
          %233 = sbr.rel (%p231) target = $region32
        $region31: #{leadnn_forward.1} parent=11 // pred_region
          _
        $region32: #{leadnn_forward.1} parent=11 // pred_fallthru
          _
        // Predicated region
        $region33: #{leadnn_forward.1} parent=11 // pred_check
          %p234 = pneg %p168
        $region34: #{leadnn_forward.1} parent=11 // pred_check_branch
          %236 = sbr.rel (%p234) target = $region36
        $region35: #{leadnn_forward.1} parent=11 // pred_region
          _
        $region36: #{leadnn_forward.1} parent=11 // pred_fallthru
          _
      $region12: #{leadnn_forward.1} parent=5 // pred_fallthru
        _
      %p237 = scmp.lt.s32.totalorder %s16, 2
      // Predicated region
      $region37: #{leadnn_forward.1} parent=5 // pred_check
        %p238 = pneg %p237
      $region38: #{leadnn_forward.1} parent=5 // pred_check_branch
        %240 = sbr.rel (%p238) target = $region40
      $region39: #{leadnn_forward.1} parent=5 // pred_region
        // Predicated region
        $region41: #{leadnn_forward.1} parent=39 // pred_check
          %p241 = pneg %p36
        $region42: #{leadnn_forward.1} parent=39 // pred_check_branch
          %243 = sbr.rel (%p241) target = $region44
        $region43: #{leadnn_forward.1} parent=39 // pred_region
          %s244 = smul.u32 2, %s16
          %p245 = scmp.lt.s32.totalorder %s244, 3
          %s246 = scalar_select %p245, %s244, 3
          %s247 = smul.addr %s246, 4
          %s248 = scalar_lea.vmem %s0, %s247
          %s249 = smul.u32 2, %s16
        $region44: #{leadnn_forward.1} parent=39 // pred_fallthru
          _
      $region40: #{leadnn_forward.1} parent=5 // pred_fallthru
        _
      %p250 = scmp.le.s32.totalorder 1, %s16
      %p251 = scmp.lt.s32.totalorder %s16, 3
      %p252 = pnand %p250, %p251
      %p253 = pneg %p252
      // Predicated region
      $region45: #{leadnn_forward.1} parent=5 // pred_check
        _
      $region46: #{leadnn_forward.1} parent=5 // pred_check_branch
        %255 = sbr.rel (%p252) target = $region48
      $region47: #{leadnn_forward.1} parent=5 // pred_region
        %s256 = ssub.s32 %s16, 1
        // Predicated region
        $region49: #{leadnn_forward.1} parent=47 // pred_check
          %p257 = pneg %p105
        $region50: #{leadnn_forward.1} parent=47 // pred_check_branch
          %259 = sbr.rel (%p257) target = $region52
        $region51: #{leadnn_forward.1} parent=47 // pred_region
          %260 = dma.done [#allocation4], 1024
        $region52: #{leadnn_forward.1} parent=47 // pred_fallthru
          _
        %s261 = smul.u32 2, %s21
        %p262 = scmp.lt.s32.totalorder %s261, 3
        %s263 = scalar_select %p262, %s261, 3
        %s264 = smul.addr %s263, 4
        %s265 = scalar_lea.vmem %s0, %s264
        %p266 = pneg %p42
        %p267 = pneg %p39
        %p268 = pneg %p63
        %p269 = pneg %p60
        %p270 = pneg %p84
        %p271 = pneg %p81
        %p272 = pneg %p105
        %p273 = pneg %p102
        %p274 = pneg %p126
        %p275 = pneg %p123
        %p276 = pneg %p147
        %p277 = pneg %p144
        %p278 = pneg %p168
        %p279 = pneg %p165
        %p280 = pneg %p194
        %p281 = pneg %p191
        %s282 = smul.u32 2, %s21
        %p283 = scmp.lt.s32.totalorder %s282, 3
        %s284 = scalar_select %p283, %s282, 3
        %s285 = smul.addr %s284, 8
        %s286 = scalar_lea.vmem %s7, %s285
        %s287 = smul.u32 2, %s21
        %p288 = scmp.lt.s32.totalorder %s287, 3
        %s289 = scalar_select %p288, %s287, 3
        %s290 = smul.addr %s289, 4
        %s291 = scalar_lea.vmem %s0, %s290
        %s292 = smul.u32 2, %s21
        %s293 = smul.u32 2, %s21
        %p294 = scmp.lt.s32.totalorder %s293, 3
        %s295 = scalar_select %p294, %s293, 3
        %s296 = smul.addr %s295, 8
        %s297 = scalar_lea.vmem %s7, %s296
        %s298 = smul.u32 2, %s21
        %v300 = vld [vmem:[%s291] sm:$0xf]
        %v301 = vld [vmem:[%s291 + $0x4] sm:$0xf]
        %v302 = vld [vmem:[%s1] sm:$0xf]
        %v303 = vld [vmem:[%s1 + $0x4] sm:$0xf]
        %v304 = vld [vmem:[%s1 + $0x8] sm:$0xf]
        %v305 = vld [vmem:[%s1 + $0xc] sm:$0xf]
        %v306 = vld [vmem:[%s2] sm:$0x1]
        %v308 = vlaneseq
        %v309 = vshrl.u32 %v308, 7
        %v310 = vsub.s32 0, %v309
        %v311 = vrot.slane %v306, %v310
        %v315 = vunpack.c.l.b16 %v300
        %v316 = vunpack.c.l.b16 %v301
        %v317 = vpack.c.b16 %v316, %v315
        %v322 = vunpack.c.l.b16 %v302
        %v323 = vunpack.c.l.b16 %v303
        %v324 = vunpack.c.l.b16 %v304
        %v325 = vunpack.c.l.b16 %v305
        %v326 = vpack.c.b16 %v323, %v322
        %v327 = vpack.c.b16 %v325, %v324
        %vm330 = vcmask 261120
        %v332 = vsel %vm330, %v317, 0
        %334 = vmatprep.subr.bf16.mxu0 0
        %335 = vmatpush1.bf16.msra.mxu0 %v326
        %336 = vmatprep.subr.bf16.mxu0 0
        %337 = vmatpush1.bf16.msra.mxu0 %v327
        %338 = vmatprep.subr.bf16.mxu0 0
        %339 = vmatpush1.bf16.msra.mxu0 0
        %340 = vmatprep.subr.bf16.mxu0 0
        %341 = vmatpush1.bf16.msra.mxu0 0
        %342 = vmatprep.subr.bf16.mxu0 0
        %343 = vmatpush1.bf16.msra.mxu0 0
        %344 = vmatprep.subr.bf16.mxu0 0
        %345 = vmatpush1.bf16.msra.mxu0 0
        %346 = vmatprep.subr.bf16.mxu0 0
        %347 = vmatpush1.bf16.msra.mxu0 0
        %348 = vmatprep.subr.bf16.mxu0 0
        %349 = vmatpush1.bf16.msra.mxu0 0
        %350 = vmatprep.subr.bf16.mxu0 0
        %351 = vmatpush1.bf16.msra.mxu0 0
        %352 = vmatprep.subr.bf16.mxu0 0
        %353 = vmatpush1.bf16.msra.mxu0 0
        %354 = vmatprep.subr.bf16.mxu0 0
        %355 = vmatpush1.bf16.msra.mxu0 0
        %356 = vmatprep.subr.bf16.mxu0 0
        %357 = vmatpush1.bf16.msra.mxu0 0
        %358 = vmatprep.subr.bf16.mxu0 0
        %359 = vmatpush1.bf16.msra.mxu0 0
        %360 = vmatprep.subr.bf16.mxu0 0
        %361 = vmatpush1.bf16.msra.mxu0 0
        %362 = vmatprep.subr.bf16.mxu0 0
        %363 = vmatpush1.bf16.msra.mxu0 0
        %364 = vmatprep.subr.bf16.mxu0 0
        %365 = vmatpush1.bf16.msra.mxu0 0
        %366 = vmatprep.mubr.bf16.mxu0 0
        %367 = vmatmul.mubr.bf16.gmra.mrb[0].mxu0 %v332
        %v368 = vpop.f32.mrb[0].mxu0
        %v369 = vadd.f32 %v311, %v368
        %v370 = vpop.f32.mrb[0].mxu0
        %v371 = vpop.f32.mrb[0].mxu0
        %v372 = vadd.f32 %v311, %v371
        %v373 = vpop.f32.mrb[0].mxu0
        %374 = vdwg.mxu0
        %v375 = vmax.f32 %v369, 0.0
        %v376 = vmax.f32 %v372, 0.0
        %v377 = vpack.c.bf16 %v376, %v375
        %v378 = vld [vmem:[#allocation3] sm:$0xf]
        %v379 = vld [vmem:[#allocation3 + $0x4] sm:$0xf]
        %v380 = vld [vmem:[#allocation3 + $0x8] sm:$0xf]
        %v381 = vld [vmem:[#allocation3 + $0xc] sm:$0xf]
        %v382 = vld [vmem:[#allocation3 + $0x10] sm:$0xf]
        %v383 = vld [vmem:[#allocation3 + $0x14] sm:$0xf]
        %v384 = vld [vmem:[#allocation3 + $0x18] sm:$0xf]
        %v385 = vld [vmem:[#allocation3 + $0x1c] sm:$0xf]
        %v386 = vld [vmem:[#allocation3 + $0x20] sm:$0xf]
        %v387 = vld [vmem:[#allocation3 + $0x24] sm:$0xf]
        %v388 = vld [vmem:[#allocation3 + $0x28] sm:$0xf]
        %v389 = vld [vmem:[#allocation3 + $0x2c] sm:$0xf]
        %v390 = vld [vmem:[#allocation3 + $0x30] sm:$0xf]
        %v391 = vld [vmem:[#allocation3 + $0x34] sm:$0xf]
        %v392 = vld [vmem:[#allocation3 + $0x38] sm:$0xf]
        %v393 = vld [vmem:[#allocation3 + $0x3c] sm:$0xf]
        %v394 = vld [vmem:[%s4] sm:$0x1]
        %v396 = vlaneseq
        %v397 = vshrl.u32 %v396, 7
        %v398 = vsub.s32 0, %v397
        %v399 = vrot.slane %v394, %v398
        %v417 = vunpack.c.l.b16 %v378
        %v418 = vunpack.c.l.b16 %v379
        %v419 = vunpack.c.l.b16 %v380
        %v420 = vunpack.c.l.b16 %v381
        %v421 = vunpack.c.l.b16 %v382
        %v422 = vunpack.c.l.b16 %v383
        %v423 = vunpack.c.l.b16 %v384
        %v424 = vunpack.c.l.b16 %v385
        %v425 = vunpack.c.l.b16 %v386
        %v426 = vunpack.c.l.b16 %v387
        %v427 = vunpack.c.l.b16 %v388
        %v428 = vunpack.c.l.b16 %v389
        %v429 = vunpack.c.l.b16 %v390
        %v430 = vunpack.c.l.b16 %v391
        %v431 = vunpack.c.l.b16 %v392
        %v432 = vunpack.c.l.b16 %v393
        %v433 = vpack.c.b16 %v418, %v417
        %v434 = vpack.c.b16 %v420, %v419
        %v435 = vpack.c.b16 %v422, %v421
        %v436 = vpack.c.b16 %v424, %v423
        %v437 = vpack.c.b16 %v426, %v425
        %v438 = vpack.c.b16 %v428, %v427
        %v439 = vpack.c.b16 %v430, %v429
        %v440 = vpack.c.b16 %v432, %v431
        %449 = vmatprep.subr.bf16.mxu0 0
        %450 = vmatpush1.bf16.msra.mxu0 %v433
        %451 = vmatprep.subr.bf16.mxu0 0
        %452 = vmatpush1.bf16.msra.mxu0 %v434
        %453 = vmatprep.subr.bf16.mxu0 0
        %454 = vmatpush1.bf16.msra.mxu0 %v435
        %455 = vmatprep.subr.bf16.mxu0 0
        %456 = vmatpush1.bf16.msra.mxu0 %v436
        %457 = vmatprep.subr.bf16.mxu0 0
        %458 = vmatpush1.bf16.msra.mxu0 %v437
        %459 = vmatprep.subr.bf16.mxu0 0
        %460 = vmatpush1.bf16.msra.mxu0 %v438
        %461 = vmatprep.subr.bf16.mxu0 0
        %462 = vmatpush1.bf16.msra.mxu0 %v439
        %463 = vmatprep.subr.bf16.mxu0 0
        %464 = vmatpush1.bf16.msra.mxu0 %v440
        %465 = vmatprep.subr.bf16.mxu0 0
        %466 = vmatpush1.bf16.msra.mxu0 0
        %467 = vmatprep.subr.bf16.mxu0 0
        %468 = vmatpush1.bf16.msra.mxu0 0
        %469 = vmatprep.subr.bf16.mxu0 0
        %470 = vmatpush1.bf16.msra.mxu0 0
        %471 = vmatprep.subr.bf16.mxu0 0
        %472 = vmatpush1.bf16.msra.mxu0 0
        %473 = vmatprep.subr.bf16.mxu0 0
        %474 = vmatpush1.bf16.msra.mxu0 0
        %475 = vmatprep.subr.bf16.mxu0 0
        %476 = vmatpush1.bf16.msra.mxu0 0
        %477 = vmatprep.subr.bf16.mxu0 0
        %478 = vmatpush1.bf16.msra.mxu0 0
        %479 = vmatprep.subr.bf16.mxu0 0
        %480 = vmatpush1.bf16.msra.mxu0 0
        %481 = vmatprep.mubr.bf16.mxu0 0
        %482 = vmatmul.mubr.bf16.gmra.mrb[0].mxu0 %v377
        %v483 = vpop.f32.mrb[0].mxu0
        %v484 = vadd.f32 %v399, %v483
        %v485 = vpop.f32.mrb[0].mxu0
        %v486 = vpop.f32.mrb[0].mxu0
        %v487 = vadd.f32 %v399, %v486
        %v488 = vpop.f32.mrb[0].mxu0
        %489 = vdwg.mxu0
        %v490 = vmax.f32 %v484, 0.0
        %v491 = vmax.f32 %v487, 0.0
        %v492 = vld [vmem:[%s5] sm:$0x1]
        %v494 = vlaneseq
        %v495 = vshrl.u32 %v494, 7
        %v496 = vsub.s32 0, %v495
        %v497 = vrot.slane %v492, %v496
        %v499 = vmul.f32 %v490, %v497
        %v500 = vmul.f32 %v491, %v497
        %501 = vadd.xlane.f32.xlu0 %v499
        %v502 = vpop.xlane.xlu0 %501
        %503 = vadd.xlane.f32.xlu0 %v500
        %v504 = vpop.xlane.xlu0 %503
        %v505 = vld [vmem:[#allocation2] sm:$0x1]
        %v507 = vlaneseq
        %v508 = vshrl.u32 %v507, 7
        %v509 = vsub.s32 0, %v508
        %v510 = vrot.slane %v505, %v509
        %v512 = vadd.f32 %v502, %v510
        %v513 = vadd.f32 %v504, %v510
        %v514 = vmul.f32 %v512, 0.5
        %v515 = vmul.f32 %v513, 0.5
        %v516 = vtanh.pop %v514
        %v517 = vtanh.pop %v515
        %v518 = vadd.f32 %v516, 1.0
        %v519 = vadd.f32 %v517, 1.0
        %v520 = vmul.f32 %v518, 0.5
        %v521 = vmul.f32 %v519, 0.5
        %vm522 = vcmask 7168
        %523 = vst.msk [vmem:[%s297] sm:$0xff] %vm522, %v520
        %524 = vst.msk [vmem:[%s297 + $0x8] sm:$0xff] %vm522, %v521
        %s525 = smul.u32 2, %s21
        %p526 = scmp.lt.s32.totalorder %s525, 3
        %s527 = scalar_select %p526, %s525, 3
        %s528 = smul.addr %s527, 8
        %s529 = scalar_lea.vmem %s7, %s528
        // Predicated region
        $region53: #{leadnn_forward.1} parent=47 // pred_check
          %p530 = pneg %p191
        $region54: #{leadnn_forward.1} parent=47 // pred_check_branch
          %532 = sbr.rel (%p530) target = $region56
        $region55: #{leadnn_forward.1} parent=47 // pred_region
          %s533 = smul.u32 2, %s21
        $region56: #{leadnn_forward.1} parent=47 // pred_fallthru
          _
      $region48: #{leadnn_forward.1} parent=5 // pred_fallthru
        _
      %p534 = scmp.le.s32.totalorder 2, %s16
      // Predicated region
      $region57: #{leadnn_forward.1} parent=5 // pred_check
        %p535 = pneg %p534
      $region58: #{leadnn_forward.1} parent=5 // pred_check_branch
        %537 = sbr.rel (%p535) target = $region60
      $region59: #{leadnn_forward.1} parent=5 // pred_region
        %s538 = ssub.s32 %s16, 2
        // Predicated region
        $region61: #{leadnn_forward.1} parent=59 // pred_check
          %p539 = pneg %p197
        $region62: #{leadnn_forward.1} parent=59 // pred_check_branch
          %541 = sbr.rel (%p539) target = $region64
        $region63: #{leadnn_forward.1} parent=59 // pred_region
          %s542 = smul.u32 2, %s22
          %p543 = scmp.lt.s32.totalorder %s542, 3
          %s544 = scalar_select %p543, %s542, 3
          %s545 = smul.addr %s544, 8
          %s546 = scalar_lea.vmem %s7, %s545
        $region64: #{leadnn_forward.1} parent=59 // pred_fallthru
          _
      $region60: #{leadnn_forward.1} parent=5 // pred_fallthru
        _
    $region6: #{leadnn_forward.1} parent=1 // loop_footer
      %s20 = sadd.s32 1, %s16
    $region7: #{leadnn_forward.1} parent=1 // loop_footer_branch
      %15 = sbr.rel target = $region3
    $region8: #{leadnn_forward.1} parent=1 // loop_exit
      _
    %547 = vsyncpa [#allocation4], 1
    %s548 = scalar_lea.sflag [#allocation4], 1
    %549 = vsyncpa %s548, 1

</llo_original>
